<compile_context>
chip_gen: v7x
topology: tpu7x:2x2x1
jax: 0.10.0
libtpu: 0.0.40
codegen_flags: <defaults>
</compile_context>

<pallas_src>
import functools

import jax
import jax.numpy as jnp
from jax.experimental import pallas as pl
from jax.experimental.pallas import tpu as pltpu


# --------------------------------------------------------------------------- #
# Kernel body
# --------------------------------------------------------------------------- #
def _swiglu_kernel(x_ref, wup_ref, w2_ref, o_ref, acc_ref):
    """One (row-tile i, ff-tile k) grid step.

    x_ref  : (tm, d_model)        VMEM  token rows (resident across the ff axis)
    wup_ref: (d_model, 2*tf)      VMEM  fused [W1.T | Wg.T] tile for ff-tile k
    w2_ref : (tf, d_model)        VMEM  W2.T tile for ff-tile k
    o_ref  : (tm, d_model)        VMEM  output rows (written at last ff step)
    acc_ref: (tm, d_model) f32    VMEM  running accumulator over ff tiles
    """
    k = pl.program_id(1)

    @pl.when(k == 0)
    def _():
        acc_ref[...] = jnp.zeros_like(acc_ref)

    x = x_ref[...]

    # Fused up + gate projection: one MXU pass, RHS contracted on sublane axis.
    h = jax.lax.dot_general(
        x, wup_ref[...], (((1,), (0,)), ((), ())),
        preferred_element_type=jnp.float32)            # (tm, 2*tf), f32
    tf = h.shape[1] // 2
    h1 = h[:, :tf]
    hg = h[:, tf:]

    # SiLU(h1) * gate   (VPU + EUP elementwise, f32)
    gated = (h1 * jax.nn.sigmoid(h1)) * hg

    # Partial (hsw * hg) @ W2.T for this ff tile, accumulate in f32.
    acc_ref[...] += jax.lax.dot_general(
        gated.astype(w2_ref.dtype), w2_ref[...], (((1,), (0,)), ((), ())),
        preferred_element_type=jnp.float32)

    @pl.when(k == pl.num_programs(1) - 1)
    def _():
        o_ref[...] = acc_ref[...].astype(o_ref.dtype)


# --------------------------------------------------------------------------- #
# Planning helpers (generation-aware defaults)
# --------------------------------------------------------------------------- #
def _round_up(x, m):
    return ((x + m - 1) // m) * m


def _tpu_generation():
    try:
        kind = jax.devices()[0].device_kind.lower()
    except Exception:
        kind = ""
    for g in (7, 6, 5, 4):
        if f"v{g}" in kind:
            return g
    return 6


# (requested row tile, ff tile, scoped-VMEM limit, single-buffer x, min row tiles)
_GEN_DEFAULTS = {
    4: dict(tm=512,  tf=512, vmem=100 * 1024 * 1024, x_single_buffer=False, min_row_tiles=1),
    5: dict(tm=512,  tf=512, vmem=100 * 1024 * 1024, x_single_buffer=False, min_row_tiles=1),
    6: dict(tm=1024, tf=512, vmem=100 * 1024 * 1024, x_single_buffer=False, min_row_tiles=1),
    # v7x: 64 MiB physical VMEM per TC and 2 TCs per chip.
    7: dict(tm=512,  tf=256, vmem=48 * 1024 * 1024,  x_single_buffer=True,  min_row_tiles=2),
}


def make_swiglu_plan(d_model, d_ff, *, compute_dtype=jnp.bfloat16, tm=None, tf=None):
    """Static tiling / dtype plan. Build once per (d_model, d_ff) at init."""
    gen = _tpu_generation()
    d = _GEN_DEFAULTS.get(gen, _GEN_DEFAULTS[6])
    tm = int(d["tm"] if tm is None else tm)
    tf = int(d["tf"] if tf is None else tf)
    # Keep tf lane-dense (multiple of 128); cap near d_ff for small models and
    # zero-pad d_ff up to a tf multiple (safe: zero W1 cols -> h1=0 -> SiLU(0)*g=0).
    tf = max(128, min(_round_up(tf, 128), _round_up(d_ff, 128)))
    d_ff_pad = _round_up(d_ff, tf)
    return dict(
        d_model=int(d_model), d_ff=int(d_ff), d_ff_pad=int(d_ff_pad),
        tm=tm, tf=tf,
        vmem_limit_bytes=int(d["vmem"]),
        x_single_buffer=bool(d["x_single_buffer"]),
        min_row_tiles=int(d["min_row_tiles"]),
        compute_dtype=compute_dtype,
    )


def prepare_swiglu_weights(plan, w1, wg, w2):
    """One-time (init-time) weight layout: cast to compute dtype, transpose so
    both matmuls contract the RHS over its sublane axis, pad d_ff, and fuse
    W1/Wg tile-interleaved so ff-tile k sees one lane-dense RHS [W1_k | Wg_k].

    Hoisted out of the forward so per-step HBM traffic is only the fused
    weights + activations (no per-call transpose/pad/stack)."""
    d_model = plan["d_model"]
    d_ff = plan["d_ff"]
    d_ff_pad = plan["d_ff_pad"]
    tf = plan["tf"]
    cdt = plan["compute_dtype"]
    nk = d_ff_pad // tf

    w1t = w1.astype(cdt).T                    # (d_model, d_ff)
    wgt = wg.astype(cdt).T                    # (d_model, d_ff)
    w2t = w2.astype(cdt).T                    # (d_ff, d_model)
    if d_ff_pad != d_ff:
        pad = d_ff_pad - d_ff
        w1t = jnp.pad(w1t, ((0, 0), (0, pad)))
        wgt = jnp.pad(wgt, ((0, 0), (0, pad)))
        w2t = jnp.pad(w2t, ((0, pad), (0, 0)))

    w_up = jnp.concatenate(
        [w1t.reshape(d_model, nk, tf), wgt.reshape(d_model, nk, tf)], axis=2
    ).reshape(d_model, 2 * d_ff_pad)          # tile k = [W1_k | Wg_k]
    return w_up, w2t


# --------------------------------------------------------------------------- #
# Forward
# --------------------------------------------------------------------------- #
@functools.partial(
    jax.jit,
    static_argnames=("tm", "tf", "vmem_limit_bytes", "x_single_buffer",
                     "min_row_tiles", "compute_dtype"))
def _swiglu_forward_impl(x, w_up, w2t, *, tm, tf, vmem_limit_bytes,
                         x_single_buffer, min_row_tiles, compute_dtype):
    orig_shape = x.shape
    out_dtype = x.dtype
    d_model = orig_shape[-1]
    d_ff_pad = w2t.shape[0]
    nk = d_ff_pad // tf

    x2d = x.reshape(-1, d_model).astype(compute_dtype)
    m = x2d.shape[0]

    # Row-tile selection: derive the tile from the actual token count so the
    # padded tail is small (e.g. m=300 -> 2 tiles of 152, not 2 of 256), keep
    # x8 sublane alignment, and on v7x force >= 2 row tiles so both
    # TensorCores get work along the "parallel" grid axis.
    n_rows = max(pl.cdiv(m, tm), min_row_tiles if m >= 16 else 1)
    tm_eff = _round_up(pl.cdiv(m, n_rows), 8)
    m_pad = n_rows * tm_eff
    if m_pad != m:
        x2d = jnp.pad(x2d, ((0, m_pad - m), (0, 0)))

    cbytes = jnp.dtype(compute_dtype).itemsize
    obytes = jnp.dtype(out_dtype).itemsize
    weight_bytes = (w_up.size + w2t.size) * cbytes
    cost = pl.CostEstimate(
        flops=6 * m_pad * d_model * d_ff_pad,
        transcendentals=m_pad * d_ff_pad,
        # Weights are re-streamed once per row tile (index maps depend only on k).
        bytes_accessed=(x2d.size * cbytes + m_pad * d_model * obytes
                        + weight_bytes * n_rows),
    )

    if x_single_buffer:
        # x's block index is constant over k; single-buffering it saves one
        # tm x d_model VMEM buffer on the VMEM-tight v7x chip.
        x_spec = pl.BlockSpec((tm_eff, d_model), lambda i, k: (i, 0),
                              pipeline_mode=pl.Buffered(1))
    else:
        x_spec = pl.BlockSpec((tm_eff, d_model), lambda i, k: (i, 0))

    out = pl.pallas_call(
        _swiglu_kernel,
        out_shape=jax.ShapeDtypeStruct((m_pad, d_model), out_dtype),
        grid_spec=pltpu.PrefetchScalarGridSpec(
            num_scalar_prefetch=0,
            grid=(n_rows, nk),                                     # ff axis last
            in_specs=[
                x_spec,                                            # x row tile
                pl.BlockSpec((d_model, 2 * tf), lambda i, k: (0, k)),  # [W1|Wg]_k
                pl.BlockSpec((tf, d_model), lambda i, k: (k, 0)),      # W2.T_k
            ],
            out_specs=pl.BlockSpec((tm_eff, d_model), lambda i, k: (i, 0)),
            scratch_shapes=[pltpu.VMEM((tm_eff, d_model), jnp.float32)],
        ),
        compiler_params=pltpu.CompilerParams(
            dimension_semantics=("parallel", "arbitrary"),
            vmem_limit_bytes=vmem_limit_bytes,
        ),
        cost_estimate=cost,
    )(x2d, w_up, w2t)

    if m_pad != m:
        out = out[:m]
    return out.reshape(orig_shape)


def swiglu_forward(x, w_up, w2t, plan):
    """Forward pass using weights already laid out by prepare_swiglu_weights."""
    return _swiglu_forward_impl(
        x, w_up, w2t,
        tm=plan["tm"], tf=plan["tf"],
        vmem_limit_bytes=plan["vmem_limit_bytes"],
        x_single_buffer=plan["x_single_buffer"],
        min_row_tiles=plan["min_row_tiles"],
        compute_dtype=plan["compute_dtype"],
    )


def swiglu_feed_forward(x, w1, wg, w2, *, compute_dtype=jnp.bfloat16,
                        tm=None, tf=None):
    """Convenience one-shot API from raw nn.Linear-layout weights.
    For production, call make_swiglu_plan + prepare_swiglu_weights once at init
    and reuse swiglu_forward per step."""
    plan = make_swiglu_plan(x.shape[-1], w1.shape[0],
                            compute_dtype=compute_dtype, tm=tm, tf=tf)
    w_up, w2t = prepare_swiglu_weights(plan, w1, wg, w2)
    return swiglu_forward(x, w_up, w2t, plan)


# --------------------------------------------------------------------------- #
# References (for testing)
# --------------------------------------------------------------------------- #
def _reference(x, w1, wg, w2):
    h1 = jnp.einsum("...d,fd->...f", x, w1)
    hg = jnp.einsum("...d,fd->...f", x, wg)
    return jnp.einsum("...f,df->...d", (h1 * jax.nn.sigmoid(h1)) * hg, w2)


def _reference_bf16(x, w1, wg, w2):
    """Mimics the kernel's bf16-in / f32-accumulate numerics."""
    xb = x.astype(jnp.bfloat16)
    h1 = jnp.einsum("...d,fd->...f", xb, w1.astype(jnp.bfloat16),
                    preferred_element_type=jnp.float32)
    hg = jnp.einsum("...d,fd->...f", xb, wg.astype(jnp.bfloat16),
                    preferred_element_type=jnp.float32)
    gated = ((h1 * jax.nn.sigmoid(h1)) * hg).astype(jnp.bfloat16)
    return jnp.einsum("...f,df->...d", gated, w2.astype(jnp.bfloat16),
                      preferred_element_type=jnp.float32).astype(x.dtype)


if __name__ == "__main__":
    # Small, deterministic setup consistent with the module (d_ff = 2*d_model,
    # a multiple of 64).
    batch, seq, d_model, d_ff = 2, 8, 32, 64

    key = jax.random.PRNGKey(0)
    kx, k1, kg, k2 = jax.random.split(key, 4)

    x = jax.random.normal(kx, (batch, seq, d_model), dtype=jnp.float32)
    w1 = jax.random.normal(k1, (d_ff, d_model), dtype=jnp.float32) * (1.0 / jnp.sqrt(d_model))
    wg = jax.random.normal(kg, (d_ff, d_model), dtype=jnp.float32) * (1.0 / jnp.sqrt(d_model))
    w2 = jax.random.normal(k2, (d_model, d_ff), dtype=jnp.float32) * (1.0 / jnp.sqrt(d_ff))

    y_ref = _reference(x, w1, wg, w2)

    # 1) f32 compute path: tight check against the pure-f32 reference.
    plan_f32 = make_swiglu_plan(d_model, d_ff, compute_dtype=jnp.float32)
    wu32, w2t32 = prepare_swiglu_weights(plan_f32, w1, wg, w2)
    y32 = jax.block_until_ready(swiglu_forward(x, wu32, w2t32, plan_f32))
    assert y32.shape == (batch, seq, d_model)
    assert jnp.allclose(y32, y_ref, atol=2e-4, rtol=2e-4), "f32 path mismatch vs reference"

    # 2) Default (production) bf16 compute path: check against a reference
    #    using the same bf16-in / f32-accumulate numerics.
    plan = make_swiglu_plan(d_model, d_ff)          # bf16 MXU inputs by default
    w_up, w2t = prepare_swiglu_weights(plan, w1, wg, w2)
    y = jax.block_until_ready(swiglu_forward(x, w_up, w2t, plan))
    y_ref_bf16 = _reference_bf16(x, w1, wg, w2)
    assert y.shape == (batch, seq, d_model)
    assert jnp.allclose(y, y_ref_bf16, atol=5e-3, rtol=5e-3), "bf16 path mismatch vs bf16 reference"

    print("KERNEL_OK")
</pallas_src>

<mosaic_0001>
module attributes {stable_mosaic.version = 11 : i64} {
  func.func @_swiglu_kernel(%arg0: i32, %arg1: i32, %arg2: memref<16x32xf32, #tpu.memory_space<vmem>>, %arg3: memref<32x256xf32, #tpu.memory_space<vmem>>, %arg4: memref<128x32xf32, #tpu.memory_space<vmem>>, %arg5: memref<16x32xf32, #tpu.memory_space<vmem>>, %arg6: memref<16x32xf32, #tpu.memory_space<vmem>>) attributes {dimension_semantics = [#tpu.dimension_semantics<parallel>, #tpu.dimension_semantics<arbitrary>], iteration_bounds = array<i64: 1, 1>, scalar_prefetch = 0 : i64, scratch_operands = 1 : i64, tpu.core_type = #tpu.core_type<tc>, window_params = [{transform_indices = @transform_0, window_bounds = array<i64: 16, 32>}, {transform_indices = @transform_1, window_bounds = array<i64: 32, 256>}, {transform_indices = @transform_2, window_bounds = array<i64: 128, 32>}, {transform_indices = @transform_3, window_bounds = array<i64: 16, 32>}]} {
    %c0_i32 = arith.constant 0 : i32
    %0 = arith.cmpi eq, %arg1, %c0_i32 : i32
    %1 = arith.extui %0 : i1 to i32
    %c0_i32_0 = arith.constant 0 : i32
    %2 = arith.cmpi ne, %1, %c0_i32_0 : i32
    scf.if %2 {
      %cst_14 = arith.constant 0.000000e+00 : f32
      %23 = vector.broadcast %cst_14 : f32 to vector<16x32xf32>
      %c0_15 = arith.constant 0 : index
      %c0_16 = arith.constant 0 : index
      %24 = vector.load %arg6[%c0_15, %c0_16] : memref<16x32xf32, #tpu.memory_space<vmem>>, vector<16x32xf32>
      tpu.vector_store %arg6[%c0_15, %c0_16], %23 {strides = array<i32>} : memref<16x32xf32, #tpu.memory_space<vmem>>, vector<16x32xf32>,
    } else {
    }
    %c0 = arith.constant 0 : index
    %c0_1 = arith.constant 0 : index
    %3 = vector.load %arg2[%c0, %c0_1] : memref<16x32xf32, #tpu.memory_space<vmem>>, vector<16x32xf32>
    %c0_2 = arith.constant 0 : index
    %c0_3 = arith.constant 0 : index
    %4 = vector.load %arg3[%c0_2, %c0_3] : memref<32x256xf32, #tpu.memory_space<vmem>>, vector<32x256xf32>
    %cst = arith.constant dense<0.000000e+00> : vector<16x256xf32>
    %5 = tpu.matmul %3, %4, %cst {dimension_numbers = #tpu.dot_dimension_numbers<[1], [0], [0], [1], [0, 0, 1, 1], [], []>} : vector<16x32xf32>, vector<32x256xf32>, vector<16x256xf32> -> vector<16x256xf32>
    %6 = vector.extract_strided_slice %5 {offsets = [0, 0], sizes = [16, 128], strides = [1, 1]} : vector<16x256xf32> to vector<16x128xf32>
    %7 = vector.extract_strided_slice %5 {offsets = [0, 128], sizes = [16, 128], strides = [1, 1]} : vector<16x256xf32> to vector<16x128xf32>
    %8 = arith.negf %6 : vector<16x128xf32>
    %9 = math.exp %8 : vector<16x128xf32>
    %cst_4 = arith.constant 1.000000e+00 : f32
    %10 = vector.broadcast %cst_4 : f32 to vector<16x128xf32>
    %11 = arith.addf %10, %9 : vector<16x128xf32>
    %12 = arith.divf %10, %11 : vector<16x128xf32>
    %13 = arith.mulf %6, %12 : vector<16x128xf32>
    %14 = arith.mulf %13, %7 : vector<16x128xf32>
    %c0_5 = arith.constant 0 : index
    %c0_6 = arith.constant 0 : index
    %15 = vector.load %arg6[%c0_5, %c0_6] : memref<16x32xf32, #tpu.memory_space<vmem>>, vector<16x32xf32>
    %c0_7 = arith.constant 0 : index
    %c0_8 = arith.constant 0 : index
    %16 = vector.load %arg4[%c0_7, %c0_8] : memref<128x32xf32, #tpu.memory_space<vmem>>, vector<128x32xf32>
    %cst_9 = arith.constant dense<0.000000e+00> : vector<16x32xf32>
    %17 = tpu.matmul %14, %16, %cst_9 {dimension_numbers = #tpu.dot_dimension_numbers<[1], [0], [0], [1], [0, 0, 1, 1], [], []>} : vector<16x128xf32>, vector<128x32xf32>, vector<16x32xf32> -> vector<16x32xf32>
    %18 = arith.addf %15, %17 : vector<16x32xf32>
    %c0_10 = arith.constant 0 : index
    %c0_11 = arith.constant 0 : index
    %19 = vector.load %arg6[%c0_10, %c0_11] : memref<16x32xf32, #tpu.memory_space<vmem>>, vector<16x32xf32>
    tpu.vector_store %arg6[%c0_10, %c0_11], %18 {strides = array<i32>} : memref<16x32xf32, #tpu.memory_space<vmem>>, vector<16x32xf32>,
    %c0_i32_12 = arith.constant 0 : i32
    %20 = arith.cmpi eq, %arg1, %c0_i32_12 : i32
    %21 = arith.extui %20 : i1 to i32
    %c0_i32_13 = arith.constant 0 : i32
    %22 = arith.cmpi ne, %21, %c0_i32_13 : i32
    scf.if %22 {
      %c0_14 = arith.constant 0 : index
      %c0_15 = arith.constant 0 : index
      %23 = vector.load %arg6[%c0_14, %c0_15] : memref<16x32xf32, #tpu.memory_space<vmem>>, vector<16x32xf32>
      %c0_16 = arith.constant 0 : index
      %c0_17 = arith.constant 0 : index
      %24 = vector.load %arg5[%c0_16, %c0_17] : memref<16x32xf32, #tpu.memory_space<vmem>>, vector<16x32xf32>
      tpu.vector_store %arg5[%c0_16, %c0_17], %23 {strides = array<i32>} : memref<16x32xf32, #tpu.memory_space<vmem>>, vector<16x32xf32>,
    } else {
    }
    return
  }
  func.func @transform_0(%arg0: i32, %arg1: i32) -> (i32, i32) {
    %c0_i32 = arith.constant 0 : i32
    %c0_i32_0 = arith.constant 0 : i32
    return %arg0, %c0_i32 : i32, i32
  }
  func.func @transform_1(%arg0: i32, %arg1: i32) -> (i32, i32) {
    %c0_i32 = arith.constant 0 : i32
    %c0_i32_0 = arith.constant 0 : i32
    return %c0_i32, %arg1 : i32, i32
  }
  func.func @transform_2(%arg0: i32, %arg1: i32) -> (i32, i32) {
    %c0_i32 = arith.constant 0 : i32
    %c0_i32_0 = arith.constant 0 : i32
    return %arg1, %c0_i32 : i32, i32
  }
  func.func @transform_3(%arg0: i32, %arg1: i32) -> (i32, i32) {
    %c0_i32 = arith.constant 0 : i32
    %c0_i32_0 = arith.constant 0 : i32
    return %arg0, %c0_i32 : i32, i32
  }
}

</mosaic_0001>

<llo_original>
// kernel: _swiglu_forward_impl.1
$region0: #{_swiglu_forward_impl.1}
  #allocation0 [shape = 'u32[]', space=smem, size = 0x4, offset = 0x4, fixed_abs, tag = 'smem constant byte address 0x4 - core index']
  #allocation1 [shape = 'u32[144,128]{1,0:T(1,128)}', space=vmem, size = 0x12000, scoped, tag = 'internal scratch']
  #allocation2 [shape = 'f32[16,32]{1,0:T(8,128)}', space=vmem, size = 0x2000, scoped, tag = 'scratch operand']
  %s0 = inlined_call_operand.hbm [shape: f32[16,32], index: 0, kind: input, shape index: {}]
  %s1 = inlined_call_operand.hbm [shape: f32[32,256], index: 1, kind: input, shape index: {}]
  %s2 = inlined_call_operand.hbm [shape: f32[128,32], index: 2, kind: input, shape index: {}]
  %s3 = inlined_call_operand.hbm [shape: f32[16,32], index: 3, kind: output, shape index: {}]
  %s4 = sld [smem:[#allocation0]]
  $region42: #{_swiglu_forward_impl.1} parent=0
    _
  %s6 = ssub.s32 1, %s4
  %s7 = scalar_select 0, %s6, %s4
  $region1: #{_swiglu_forward_impl.1} parent=0
    #allocation3 [shape = 'u8[8192]{0}', space=vmem, size = 0x2000, scoped, tag = 'input window, operand 0, single buffered']
    #allocation4 [shape = 's32[1]{0}', space=sflag, size = 0x4, scoped, tag = 'scoped memory for _swiglu_forward_impl.1']
    #allocation5 [shape = 's32[1]{0}', space=sflag, size = 0x4, scoped, tag = 'scoped memory for _swiglu_forward_impl.1']
    #allocation6 [shape = 'u8[32768]{0}', space=vmem, size = 0x8000, scoped, tag = 'input window, operand 1, single buffered']
    #allocation7 [shape = 's32[1]{0}', space=sflag, size = 0x4, scoped, tag = 'scoped memory for _swiglu_forward_impl.1']
    #allocation8 [shape = 'u8[65536]{0}', space=vmem, size = 0x10000, scoped, tag = 'input window, operand 2, single buffered']
    #allocation9 [shape = 'u8[8192]{0}', space=vmem, size = 0x2000, scoped, tag = 'output window, operand 0, single buffered']
    %8 = vsyncpa [#allocation4], 0
    %9 = vsyncpa [#allocation7], 0
    %10 = vsyncpa [#allocation5], 0
    // Predicated region
    $region2: #{_swiglu_forward_impl.1} parent=1 // pred_check
      _
    $region3: #{_swiglu_forward_impl.1} parent=1 // pred_check_branch
      %12 = sbr.rel (0) target = $region5
    $region4: #{_swiglu_forward_impl.1} parent=1 // pred_region
      %s14 = ssub.s32 256, 256
      %15 = vsyncadd [#allocation4], %s14
      %s16 = sshll.u32 [#allocation3], 4
      %s17 = int_to_ptr.vmem [resolvable:$true] %s16
      %22 = dma.hbm_to_vmem [thread:$0]  %s0, 256, %s17, [#allocation4], 128, 128, 8
    $region5: #{_swiglu_forward_impl.1} parent=1 // pred_fallthru
      _
    // Predicated region
    $region6: #{_swiglu_forward_impl.1} parent=1 // pred_check
      _
    $region7: #{_swiglu_forward_impl.1} parent=1 // pred_check_branch
      %24 = sbr.rel (0) target = $region9
    $region8: #{_swiglu_forward_impl.1} parent=1 // pred_region
      %s26 = ssub.s32 1024, 1024
      %27 = vsyncadd [#allocation7], %s26
      %s28 = sshll.u32 [#allocation6], 4
      %s29 = int_to_ptr.vmem [resolvable:$true] %s28
      %34 = dma.hbm_to_vmem [thread:$0]  %s1, 1024, %s29, [#allocation7], 256, 256, 16
    $region9: #{_swiglu_forward_impl.1} parent=1 // pred_fallthru
      _
    // Predicated region
    $region10: #{_swiglu_forward_impl.1} parent=1 // pred_check
      _
    $region11: #{_swiglu_forward_impl.1} parent=1 // pred_check_branch
      %36 = sbr.rel (0) target = $region13
    $region12: #{_swiglu_forward_impl.1} parent=1 // pred_region
      %s38 = ssub.s32 2048, 2048
      %39 = vsyncadd [#allocation7], %s38
      %s40 = sshll.u32 [#allocation8], 4
      %s41 = int_to_ptr.vmem [resolvable:$true] %s40
      %46 = dma.hbm_to_vmem [thread:$0]  %s2, 2048, %s41, [#allocation7], 128, 128, 8
    $region13: #{_swiglu_forward_impl.1} parent=1 // pred_fallthru
      _
    // Predicated region
    $region14: #{_swiglu_forward_impl.1} parent=1 // pred_check
      _
    $region15: #{_swiglu_forward_impl.1} parent=1 // pred_check_branch
      %48 = sbr.rel (0) target = $region17
    $region16: #{_swiglu_forward_impl.1} parent=1 // pred_region
      %49 = dma.done [#allocation4], 256
    $region17: #{_swiglu_forward_impl.1} parent=1 // pred_fallthru
      _
    // Predicated region
    $region18: #{_swiglu_forward_impl.1} parent=1 // pred_check
      _
    $region19: #{_swiglu_forward_impl.1} parent=1 // pred_check_branch
      %51 = sbr.rel (0) target = $region21
    $region20: #{_swiglu_forward_impl.1} parent=1 // pred_region
      %52 = dma.done [#allocation7], 1024
    $region21: #{_swiglu_forward_impl.1} parent=1 // pred_fallthru
      _
    // Predicated region
    $region22: #{_swiglu_forward_impl.1} parent=1 // pred_check
      _
    $region23: #{_swiglu_forward_impl.1} parent=1 // pred_check_branch
      %54 = sbr.rel (0) target = $region25
    $region24: #{_swiglu_forward_impl.1} parent=1 // pred_region
      %55 = dma.done [#allocation7], 2048
    $region25: #{_swiglu_forward_impl.1} parent=1 // pred_fallthru
      _
    %p56 = scmp.eq.s32.totalorder 0, 0
    // Predicated region
    $region26: #{_swiglu_forward_impl.1} parent=1 // pred_check
      %p57 = pneg %p56
    $region27: #{_swiglu_forward_impl.1} parent=1 // pred_check_branch
      %59 = sbr.rel (%p57) target = $region29
    $region28: #{_swiglu_forward_impl.1} parent=1 // pred_region
      %vm60 = vcmask 261120
      %61 = vst.msk [vmem:[#allocation2] sm:$0xff] %vm60, 0.0
      %62 = vst.msk [vmem:[#allocation2 + $0x8] sm:$0xff] %vm60, 0.0
    $region29: #{_swiglu_forward_impl.1} parent=1 // pred_fallthru
      _
    %v63 = vld [vmem:[#allocation3] sm:$0xff]
    %v64 = vld [vmem:[#allocation3 + $0x8] sm:$0xff]
    %v65 = vld [vmem:[#allocation6] sm:$0xff]
    %v66 = vld [vmem:[#allocation6 + $0x8] sm:$0xff]
    %v67 = vld [vmem:[#allocation6 + $0x10] sm:$0xff]
    %v68 = vld [vmem:[#allocation6 + $0x18] sm:$0xff]
    %v69 = vld [vmem:[#allocation6 + $0x20] sm:$0xff]
    %v70 = vld [vmem:[#allocation6 + $0x28] sm:$0xff]
    %v71 = vld [vmem:[#allocation6 + $0x30] sm:$0xff]
    %v72 = vld [vmem:[#allocation6 + $0x38] sm:$0xff]
    %vm73 = vcmask 261120
    %v75 = vsel %vm73, %v63, 0
    %v78 = vsel %vm73, %v64, 0
    %80 = vmatprep.subr.mxu0 %v66
    %81 = vmatpush1.msra.mxu0 %v65
    %82 = vmatprep.subr.mxu0 %v68
    %83 = vmatpush1.msra.mxu0 %v67
    %84 = vmatprep.subr.mxu0 %v70
    %85 = vmatpush1.msra.mxu0 %v69
    %86 = vmatprep.subr.mxu0 %v72
    %87 = vmatpush1.msra.mxu0 %v71
    %88 = vmatprep.subr.mxu0 0.0
    %89 = vmatpush1.msra.mxu0 0.0
    %90 = vmatprep.subr.mxu0 0.0
    %91 = vmatpush1.msra.mxu0 0.0
    %92 = vmatprep.subr.mxu0 0.0
    %93 = vmatpush1.msra.mxu0 0.0
    %94 = vmatprep.subr.mxu0 0.0
    %95 = vmatpush1.msra.mxu0 0.0
    %96 = vmatprep.subr.mxu0 0.0
    %97 = vmatpush1.msra.mxu0 0.0
    %98 = vmatprep.subr.mxu0 0.0
    %99 = vmatpush1.msra.mxu0 0.0
    %100 = vmatprep.subr.mxu0 0.0
    %101 = vmatpush1.msra.mxu0 0.0
    %102 = vmatprep.subr.mxu0 0.0
    %103 = vmatpush1.msra.mxu0 0.0
    %104 = vmatprep.subr.mxu0 0.0
    %105 = vmatpush1.msra.mxu0 0.0
    %106 = vmatprep.subr.mxu0 0.0
    %107 = vmatpush1.msra.mxu0 0.0
    %108 = vmatprep.subr.mxu0 0.0
    %109 = vmatpush1.msra.mxu0 0.0
    %110 = vmatprep.subr.mxu0 0.0
    %111 = vmatpush1.msra.mxu0 0.0
    %112 = vmatprep.subr.mxu0 0.0
    %113 = vmatpush1.msra.mxu0 0.0
    %114 = vmatprep.subr.mxu0 0.0
    %115 = vmatpush1.msra.mxu0 0.0
    %116 = vmatprep.subr.mxu0 0.0
    %117 = vmatpush1.msra.mxu0 0.0
    %118 = vmatprep.subr.mxu0 0.0
    %119 = vmatpush1.msra.mxu0 0.0
    %120 = vmatprep.subr.mxu0 0.0
    %121 = vmatpush1.msra.mxu0 0.0
    %122 = vmatprep.subr.mxu0 0.0
    %123 = vmatpush1.msra.mxu0 0.0
    %124 = vmatprep.subr.mxu0 0.0
    %125 = vmatpush1.msra.mxu0 0.0
    %126 = vmatprep.subr.mxu0 0.0
    %127 = vmatpush1.msra.mxu0 0.0
    %128 = vmatprep.subr.mxu0 0.0
    %129 = vmatpush1.msra.mxu0 0.0
    %130 = vmatprep.subr.mxu0 0.0
    %131 = vmatpush1.msra.mxu0 0.0
    %132 = vmatprep.subr.mxu0 0.0
    %133 = vmatpush1.msra.mxu0 0.0
    %134 = vmatprep.subr.mxu0 0.0
    %135 = vmatpush1.msra.mxu0 0.0
    %136 = vmatprep.subr.mxu0 0.0
    %137 = vmatpush1.msra.mxu0 0.0
    %138 = vmatprep.subr.mxu0 0.0
    %139 = vmatpush1.msra.mxu0 0.0
    %140 = vmatprep.subr.mxu0 0.0
    %141 = vmatpush1.msra.mxu0 0.0
    %142 = vmatprep.subr.mxu0 0.0
    %143 = vmatpush1.msra.mxu0 0.0
    %144 = vmatprep.mubr.f32.mxu0 0.0
    %145 = vmatmul.mubr.f32.gmra.mrb[0].mxu0 %v75
    %v146 = vpop.f32.mrb[0].mxu0
    %v147 = vadd.f32 0.0, %v146
    %v148 = vpop.f32.mrb[0].mxu0
    %v149 = vadd.f32 0.0, %v148
    %150 = vmatprep.mubr.f32.mxu0 0.0
    %151 = vmatmul.mubr.f32.gmra.mrb[0].mxu0 %v78
    %v152 = vpop.f32.mrb[0].mxu0
    %v153 = vadd.f32 0.0, %v152
    %v154 = vpop.f32.mrb[0].mxu0
    %v155 = vadd.f32 0.0, %v154
    %156 = vdwg.mxu0
    %v157 = vxor.u32 %v147, 2147483648
    %v158 = vxor.u32 %v153, 2147483648
    %v159 = vmul.f32 %v157, 1.442695
    %v160 = vpow.pop %v159
    %v161 = vmul.f32 %v158, 1.442695
    %v162 = vpow.pop %v161
    %v163 = vadd.f32 %v160, 1.0
    %v164 = vadd.f32 %v162, 1.0
    %v165 = vrcp.pop %v163
    %v166 = vmul.f32 1.0, %v165
    %v167 = vrcp.pop %v164
    %v168 = vmul.f32 1.0, %v167
    %v169 = vmul.f32 %v147, %v166
    %v170 = vmul.f32 %v153, %v168
    %v171 = vmul.f32 %v169, %v149
    %v172 = vmul.f32 %v170, %v155
    %v173 = vld [vmem:[#allocation2] sm:$0xff]
    %v174 = vld [vmem:[#allocation2 + $0x8] sm:$0xff]
    %v175 = vld [vmem:[#allocation8] sm:$0xff]
    %v176 = vld [vmem:[#allocation8 + $0x8] sm:$0xff]
    %v177 = vld [vmem:[#allocation8 + $0x10] sm:$0xff]
    %v178 = vld [vmem:[#allocation8 + $0x18] sm:$0xff]
    %v179 = vld [vmem:[#allocation8 + $0x20] sm:$0xff]
    %v180 = vld [vmem:[#allocation8 + $0x28] sm:$0xff]
    %v181 = vld [vmem:[#allocation8 + $0x30] sm:$0xff]
    %v182 = vld [vmem:[#allocation8 + $0x38] sm:$0xff]
    %v183 = vld [vmem:[#allocation8 + $0x40] sm:$0xff]
    %v184 = vld [vmem:[#allocation8 + $0x48] sm:$0xff]
    %v185 = vld [vmem:[#allocation8 + $0x50] sm:$0xff]
    %v186 = vld [vmem:[#allocation8 + $0x58] sm:$0xff]
    %v187 = vld [vmem:[#allocation8 + $0x60] sm:$0xff]
    %v188 = vld [vmem:[#allocation8 + $0x68] sm:$0xff]
    %v189 = vld [vmem:[#allocation8 + $0x70] sm:$0xff]
    %v190 = vld [vmem:[#allocation8 + $0x78] sm:$0xff]
    %191 = vmatprep.subr.mxu0 0.0
    %192 = vmatpush1.msra.mxu0 %v175
    %193 = vmatprep.subr.mxu0 0.0
    %194 = vmatpush1.msra.mxu0 %v176
    %195 = vmatprep.subr.mxu0 0.0
    %196 = vmatpush1.msra.mxu0 %v177
    %197 = vmatprep.subr.mxu0 0.0
    %198 = vmatpush1.msra.mxu0 %v178
    %199 = vmatprep.subr.mxu0 0.0
    %200 = vmatpush1.msra.mxu0 %v179
    %201 = vmatprep.subr.mxu0 0.0
    %202 = vmatpush1.msra.mxu0 %v180
    %203 = vmatprep.subr.mxu0 0.0
    %204 = vmatpush1.msra.mxu0 %v181
    %205 = vmatprep.subr.mxu0 0.0
    %206 = vmatpush1.msra.mxu0 %v182
    %207 = vmatprep.subr.mxu0 0.0
    %208 = vmatpush1.msra.mxu0 %v183
    %209 = vmatprep.subr.mxu0 0.0
    %210 = vmatpush1.msra.mxu0 %v184
    %211 = vmatprep.subr.mxu0 0.0
    %212 = vmatpush1.msra.mxu0 %v185
    %213 = vmatprep.subr.mxu0 0.0
    %214 = vmatpush1.msra.mxu0 %v186
    %215 = vmatprep.subr.mxu0 0.0
    %216 = vmatpush1.msra.mxu0 %v187
    %217 = vmatprep.subr.mxu0 0.0
    %218 = vmatpush1.msra.mxu0 %v188
    %219 = vmatprep.subr.mxu0 0.0
    %220 = vmatpush1.msra.mxu0 %v189
    %221 = vmatprep.subr.mxu0 0.0
    %222 = vmatpush1.msra.mxu0 %v190
    %223 = vmatprep.subr.mxu0 0.0
    %224 = vmatpush1.msra.mxu0 0.0
    %225 = vmatprep.subr.mxu0 0.0
    %226 = vmatpush1.msra.mxu0 0.0
    %227 = vmatprep.subr.mxu0 0.0
    %228 = vmatpush1.msra.mxu0 0.0
    %229 = vmatprep.subr.mxu0 0.0
    %230 = vmatpush1.msra.mxu0 0.0
    %231 = vmatprep.subr.mxu0 0.0
    %232 = vmatpush1.msra.mxu0 0.0
    %233 = vmatprep.subr.mxu0 0.0
    %234 = vmatpush1.msra.mxu0 0.0
    %235 = vmatprep.subr.mxu0 0.0
    %236 = vmatpush1.msra.mxu0 0.0
    %237 = vmatprep.subr.mxu0 0.0
    %238 = vmatpush1.msra.mxu0 0.0
    %239 = vmatprep.subr.mxu0 0.0
    %240 = vmatpush1.msra.mxu0 0.0
    %241 = vmatprep.subr.mxu0 0.0
    %242 = vmatpush1.msra.mxu0 0.0
    %243 = vmatprep.subr.mxu0 0.0
    %244 = vmatpush1.msra.mxu0 0.0
    %245 = vmatprep.subr.mxu0 0.0
    %246 = vmatpush1.msra.mxu0 0.0
    %247 = vmatprep.subr.mxu0 0.0
    %248 = vmatpush1.msra.mxu0 0.0
    %249 = vmatprep.subr.mxu0 0.0
    %250 = vmatpush1.msra.mxu0 0.0
    %251 = vmatprep.subr.mxu0 0.0
    %252 = vmatpush1.msra.mxu0 0.0
    %253 = vmatprep.subr.mxu0 0.0
    %254 = vmatpush1.msra.mxu0 0.0
    %255 = vmatprep.mubr.f32.mxu0 0.0
    %256 = vmatmul.mubr.f32.gmra.mrb[0].mxu0 %v171
    %v257 = vpop.f32.mrb[0].mxu0
    %v258 = vadd.f32 0.0, %v257
    %v259 = vpop.f32.mrb[0].mxu0
    %260 = vmatprep.mubr.f32.mxu0 0.0
    %261 = vmatmul.mubr.f32.gmra.mrb[0].mxu0 %v172
    %v262 = vpop.f32.mrb[0].mxu0
    %v263 = vadd.f32 0.0, %v262
    %v264 = vpop.f32.mrb[0].mxu0
    %265 = vdwg.mxu0
    %v266 = vadd.f32 %v173, %v258
    %v267 = vadd.f32 %v174, %v263
    %268 = vst.msk [vmem:[#allocation2] sm:$0xff] %vm73, %v266
    %269 = vst.msk [vmem:[#allocation2 + $0x8] sm:$0xff] %vm73, %v267
    // Predicated region
    $region30: #{_swiglu_forward_impl.1} parent=1 // pred_check
      %p270 = pneg %p56
    $region31: #{_swiglu_forward_impl.1} parent=1 // pred_check_branch
      %272 = sbr.rel (%p270) target = $region33
    $region32: #{_swiglu_forward_impl.1} parent=1 // pred_region
      %v273 = vld [vmem:[#allocation2] sm:$0xff]
      %v274 = vld [vmem:[#allocation2 + $0x8] sm:$0xff]
      %275 = vst.msk [vmem:[#allocation9] sm:$0xff] %vm73, %v273
      %276 = vst.msk [vmem:[#allocation9 + $0x8] sm:$0xff] %vm73, %v274
    $region33: #{_swiglu_forward_impl.1} parent=1 // pred_fallthru
      _
    // Predicated region
    $region34: #{_swiglu_forward_impl.1} parent=1 // pred_check
      _
    $region35: #{_swiglu_forward_impl.1} parent=1 // pred_check_branch
      %278 = sbr.rel (0) target = $region37
    $region36: #{_swiglu_forward_impl.1} parent=1 // pred_region
      %s280 = ssub.s32 256, 256
      %281 = vsyncadd [#allocation5], %s280
      %s282 = sshll.u32 [#allocation9], 4
      %s283 = int_to_ptr.vmem [resolvable:$true] %s282
      %288 = dma.vmem_to_hbm [thread:$0]  %s283, 256, %s3, [#allocation5], 128, 128, 8
    $region37: #{_swiglu_forward_impl.1} parent=1 // pred_fallthru
      _
    // Predicated region
    $region38: #{_swiglu_forward_impl.1} parent=1 // pred_check
      _
    $region39: #{_swiglu_forward_impl.1} parent=1 // pred_check_branch
      %290 = sbr.rel (0) target = $region41
    $region40: #{_swiglu_forward_impl.1} parent=1 // pred_region
      %291 = dma.done [#allocation5], 256
    $region41: #{_swiglu_forward_impl.1} parent=1 // pred_fallthru
      _
    %292 = vsyncpa [#allocation4], 1
    %293 = vsyncpa [#allocation7], 1
    %294 = vsyncpa [#allocation5], 1

</llo_original>
